<compile_context>
chip_gen: v5e
topology: v5e:2x2
jax: 0.10.0
libtpu: 0.0.40
codegen_flags: <defaults>
</compile_context>

<pallas_src>
import math
import jax
import jax.numpy as jnp
from jax.experimental import pallas as pl

# --- config (the __C object) ---
HIDDEN = 32                    # __C.HIDDEN_SIZE
HEADS = 4                      # __C.MULTI_HEAD
HEAD_DIM = HIDDEN // HEADS     # __C.HIDDEN_SIZE_HEAD
FF = 64                        # __C.FF_SIZE
SEQ = 8
BATCH = 2
EPS = 1e-6                     # MCAN LayerNorm eps


def pack_params(params):
    """Pack the 22 nn.Linear/LayerNorm tensors into 5 slabs for the kernel.

    The softmax scale 1/sqrt(HEAD_DIM) is folded into W_k / b_k (K is only used
    for attention scores, so no other compensation is needed).
    """
    (wq, bq, wk, bk, wv, bv,
     wiq, biq, wiv, biv, wgq, bgq, wgv, bgv,
     w1, b1, w2, b2, g1, beta1, g2, beta2) = params

    scale = 1.0 / math.sqrt(HEAD_DIM)
    w_qkv = jnp.concatenate([wq, wk * scale, wv], axis=1)                  # [H, 3H]
    w_ig = jnp.concatenate([jnp.concatenate([wiq, wgq], axis=1),
                            jnp.concatenate([wiv, wgv], axis=1)], axis=0)  # [2H, 2H]

    width = 3 * HIDDEN

    def row(vrow):
        vrow = vrow.reshape(1, -1)
        return jnp.pad(vrow, ((0, 0), (0, width - vrow.shape[1])))

    vec = jnp.concatenate([
        row(jnp.concatenate([bq, bk * scale, bv], axis=1)),         # 0: b_qkv
        row(jnp.concatenate([biq + biv, bgq + bgv], axis=1)),       # 1: b_ig
        row(b1),                                                    # 2
        row(b2),                                                    # 3
        row(g1), row(beta1), row(g2), row(beta2),                   # 4..7
    ], axis=0)                                                      # [8, 3H]

    return w_qkv, w_ig, w1, w2, vec


def make_masks(mask_bool):
    """Precompute the score mask and head block mask for the folded formulation.

    mask_bool: [B, S] bool, True where the key position is padding.
    Returns:
      addm:    [HEADS*B*S, B*S] additive score mask (0 / -1e9) combining
               cross-batch masking and key-padding masking.
      blkmask: [HEADS*B*S, H] block-diagonal feature mask (row's head owns
               columns h*HEAD_DIM : (h+1)*HEAD_DIM).
    Row ordering of the stacked queries is (head, batch, seq).
    """
    B, S = mask_bool.shape
    BS = B * S
    HS = HEADS * BS

    key_add = jnp.where(mask_bool.reshape(1, BS), -1e9, 0.0).astype(jnp.float32)
    rows_b = (jnp.arange(HS) % BS) // S
    cols_b = jnp.arange(BS) // S
    cross = jnp.where(rows_b[:, None] == cols_b[None, :], 0.0, -1e9).astype(jnp.float32)
    addm = cross + key_add                                                 # [HS, BS]

    rows_h = jnp.arange(HS) // BS
    cols_h = jnp.arange(HIDDEN) // HEAD_DIM
    blkmask = (rows_h[:, None] == cols_h[None, :]).astype(jnp.float32)     # [HS, H]
    return addm, blkmask


def saoa_forward(x, addm, blkmask, packed):
    """x: [B, S, H] f32; addm/blkmask from make_masks; packed from pack_params."""
    B, S, H = x.shape
    BS = B * S
    w_qkv, w_ig, w1, w2, vec = packed
    x2d = x.reshape(BS, H)

    def kernel(x_ref, addm_ref, blk_ref, wqkv_ref, wig_ref, w1_ref, w2_ref,
               vec_ref, o_ref):
        xv = x_ref[...]                      # [BS, H]
        blk = blk_ref[...]                   # [HS, H]
        vecv = vec_ref[...]                  # [8, 3H]

        b_qkv = vecv[0:1, :3 * HIDDEN]
        b_ig = vecv[1:2, :2 * HIDDEN]
        b1 = vecv[2:3, :FF]
        b2 = vecv[3:4, :HIDDEN]
        g1 = vecv[4:5, :HIDDEN]
        be1 = vecv[5:6, :HIDDEN]
        g2 = vecv[6:7, :HIDDEN]
        be2 = vecv[7:8, :HIDDEN]

        # --- fused Q/K/V projection: one [BS,H]@[H,3H] matmul (K pre-scaled) ---
        qkv = jnp.dot(xv, wqkv_ref[...], preferred_element_type=jnp.float32) + b_qkv
        q = qkv[:, :HIDDEN]
        k = qkv[:, HIDDEN:2 * HIDDEN]
        v = qkv[:, 2 * HIDDEN:]

        # --- (head, batch)-stacked block-diagonal attention ---
        q_bd = jnp.concatenate([q] * HEADS, axis=0) * blk          # [HS, H]
        scores = jax.lax.dot_general(                               # q_bd @ k^T -> [HS, BS]
            q_bd, k, (((1,), (1,)), ((), ())),
            preferred_element_type=jnp.float32)
        scores = scores + addm_ref[...]                             # cross-batch + key mask
        m = jnp.max(scores, axis=-1, keepdims=True)
        e = jnp.exp(scores - m)
        att = e * pl.reciprocal(jnp.sum(e, axis=-1, keepdims=True), approx=True)

        r = jnp.dot(att, v, preferred_element_type=jnp.float32) * blk   # [HS, H]
        atted = r[0:BS]
        for h in range(1, HEADS):                                   # fold head stacks
            atted = atted + r[h * BS:(h + 1) * BS]                  # [BS, H]

        # --- AoA gate: fused I/G via [q|atted] @ [[wiq,wgq],[wiv,wgv]] ---
        qa = jnp.concatenate([q, atted], axis=1)                    # [BS, 2H]
        ig = jnp.dot(qa, wig_ref[...], preferred_element_type=jnp.float32) + b_ig
        mh = ig[:, :HIDDEN] * jax.nn.sigmoid(ig[:, HIDDEN:])

        # --- MCAN-style LayerNorm (unbiased std, normalize by std + eps) ---
        def layernorm(inp, g, b):
            mean = jnp.mean(inp, axis=-1, keepdims=True)
            diff = inp - mean
            var = jnp.sum(diff * diff, axis=-1, keepdims=True) * (1.0 / (HIDDEN - 1))
            std = jnp.sqrt(var)
            return g * diff * pl.reciprocal(std + EPS, approx=True) + b

        x1 = layernorm(xv + mh, g1, be1)

        # --- FFN: Linear(H->FF) + ReLU + Linear(FF->H) ---
        h1 = jnp.maximum(
            jnp.dot(x1, w1_ref[...], preferred_element_type=jnp.float32) + b1, 0.0)
        ffn = jnp.dot(h1, w2_ref[...], preferred_element_type=jnp.float32) + b2

        x2 = layernorm(x1 + ffn, g2, be2)
        o_ref[...] = x2.astype(o_ref.dtype)

    args = (x2d, addm, blkmask, w_qkv, w_ig, w1, w2, vec)
    in_specs = [pl.BlockSpec(a.shape, lambda i: (0, 0)) for a in args]

    out2d = pl.pallas_call(
        kernel,
        out_shape=jax.ShapeDtypeStruct((BS, H), x.dtype),
        grid=(1,),
        in_specs=in_specs,
        out_specs=pl.BlockSpec((BS, H), lambda i: (0, 0)),
    )(*args)
    return out2d.reshape(B, S, H)


def init_params(key):
    """Deterministic init mimicking nn.Linear default (uniform +-1/sqrt(fan_in))."""
    keys = jax.random.split(key, 32)
    ki = iter(keys)

    def lin(fan_in, fan_out):
        bound = 1.0 / math.sqrt(fan_in)
        w = jax.random.uniform(next(ki), (fan_in, fan_out),
                               minval=-bound, maxval=bound, dtype=jnp.float32)
        b = jax.random.uniform(next(ki), (1, fan_out),
                               minval=-bound, maxval=bound, dtype=jnp.float32)
        return w, b

    wq, bq = lin(HIDDEN, HIDDEN)
    wk, bk = lin(HIDDEN, HIDDEN)
    wv, bv = lin(HIDDEN, HIDDEN)
    wiq, biq = lin(HIDDEN, HIDDEN)
    wiv, biv = lin(HIDDEN, HIDDEN)
    wgq, bgq = lin(HIDDEN, HIDDEN)
    wgv, bgv = lin(HIDDEN, HIDDEN)
    w1, b1 = lin(HIDDEN, FF)
    w2, b2 = lin(FF, HIDDEN)
    g1 = jnp.ones((1, HIDDEN), jnp.float32)
    beta1 = jnp.zeros((1, HIDDEN), jnp.float32)
    g2 = jnp.ones((1, HIDDEN), jnp.float32)
    beta2 = jnp.zeros((1, HIDDEN), jnp.float32)
    return (wq, bq, wk, bk, wv, bv,
            wiq, biq, wiv, biv, wgq, bgq, wgv, bgv,
            w1, b1, w2, b2, g1, beta1, g2, beta2)


if __name__ == "__main__":
    key = jax.random.PRNGKey(0)
    kx, kp = jax.random.split(key)

    x = jax.random.normal(kx, (BATCH, SEQ, HIDDEN), dtype=jnp.float32)

    # x_mask: True where the key position is padding (masked out).
    # Batch 0: all valid; batch 1: last 2 positions masked.
    pos = jnp.arange(SEQ)[None, :]                        # [1, S]
    lengths = jnp.array([SEQ, SEQ - 2])[:, None]          # [B, 1]
    mask_bool = pos >= lengths                            # [B, S]

    params = init_params(kp)
    packed = pack_params(params)
    addm, blkmask = make_masks(mask_bool)                 # hoisted out of the kernel

    out = saoa_forward(x, addm, blkmask, packed)
    jax.block_until_ready(out)
    assert out.shape == (BATCH, SEQ, HIDDEN)
    print("KERNEL_OK")
</pallas_src>

<mosaic_0001>
module attributes {stable_mosaic.version = 11 : i64} {
  func.func @kernel(%arg0: i32, %arg1: memref<16x32xf32, #tpu.memory_space<vmem>>, %arg2: memref<64x16xf32, #tpu.memory_space<vmem>>, %arg3: memref<64x32xf32, #tpu.memory_space<vmem>>, %arg4: memref<32x96xf32, #tpu.memory_space<vmem>>, %arg5: memref<64x64xf32, #tpu.memory_space<vmem>>, %arg6: memref<32x64xf32, #tpu.memory_space<vmem>>, %arg7: memref<64x32xf32, #tpu.memory_space<vmem>>, %arg8: memref<8x96xf32, #tpu.memory_space<vmem>>, %arg9: memref<16x32xf32, #tpu.memory_space<vmem>>) attributes {dimension_semantics = [#tpu.dimension_semantics<arbitrary>], iteration_bounds = array<i64: 1>, scalar_prefetch = 0 : i64, scratch_operands = 0 : i64, tpu.core_type = #tpu.core_type<tc>, window_params = [{pipeline_mode = #tpu.pipeline_mode<synchronous>, transform_indices = @transform_0, window_bounds = array<i64: 16, 32>}, {pipeline_mode = #tpu.pipeline_mode<synchronous>, transform_indices = @transform_1, window_bounds = array<i64: 64, 16>}, {pipeline_mode = #tpu.pipeline_mode<synchronous>, transform_indices = @transform_2, window_bounds = array<i64: 64, 32>}, {pipeline_mode = #tpu.pipeline_mode<synchronous>, transform_indices = @transform_3, window_bounds = array<i64: 32, 96>}, {pipeline_mode = #tpu.pipeline_mode<synchronous>, transform_indices = @transform_4, window_bounds = array<i64: 64, 64>}, {pipeline_mode = #tpu.pipeline_mode<synchronous>, transform_indices = @transform_5, window_bounds = array<i64: 32, 64>}, {pipeline_mode = #tpu.pipeline_mode<synchronous>, transform_indices = @transform_6, window_bounds = array<i64: 64, 32>}, {pipeline_mode = #tpu.pipeline_mode<synchronous>, transform_indices = @transform_7, window_bounds = array<i64: 8, 96>}, {pipeline_mode = #tpu.pipeline_mode<synchronous>, transform_indices = @transform_8, window_bounds = array<i64: 16, 32>}]} {
    %c0 = arith.constant 0 : index
    %c0_0 = arith.constant 0 : index
    %0 = vector.load %arg1[%c0, %c0_0] : memref<16x32xf32, #tpu.memory_space<vmem>>, vector<16x32xf32>
    %c0_1 = arith.constant 0 : index
    %c0_2 = arith.constant 0 : index
    %1 = vector.load %arg3[%c0_1, %c0_2] : memref<64x32xf32, #tpu.memory_space<vmem>>, vector<64x32xf32>
    %c0_3 = arith.constant 0 : index
    %c0_4 = arith.constant 0 : index
    %2 = vector.load %arg8[%c0_3, %c0_4] : memref<8x96xf32, #tpu.memory_space<vmem>>, vector<8x96xf32>
    %3 = vector.extract_strided_slice %2 {offsets = [0, 0], sizes = [1, 96], strides = [1, 1]} : vector<8x96xf32> to vector<1x96xf32>
    %4 = vector.extract_strided_slice %2 {offsets = [1, 0], sizes = [1, 64], strides = [1, 1]} : vector<8x96xf32> to vector<1x64xf32>
    %5 = vector.extract_strided_slice %2 {offsets = [2, 0], sizes = [1, 64], strides = [1, 1]} : vector<8x96xf32> to vector<1x64xf32>
    %6 = vector.extract_strided_slice %2 {offsets = [3, 0], sizes = [1, 32], strides = [1, 1]} : vector<8x96xf32> to vector<1x32xf32>
    %7 = vector.extract_strided_slice %2 {offsets = [4, 0], sizes = [1, 32], strides = [1, 1]} : vector<8x96xf32> to vector<1x32xf32>
    %8 = vector.extract_strided_slice %2 {offsets = [5, 0], sizes = [1, 32], strides = [1, 1]} : vector<8x96xf32> to vector<1x32xf32>
    %9 = vector.extract_strided_slice %2 {offsets = [6, 0], sizes = [1, 32], strides = [1, 1]} : vector<8x96xf32> to vector<1x32xf32>
    %10 = vector.extract_strided_slice %2 {offsets = [7, 0], sizes = [1, 32], strides = [1, 1]} : vector<8x96xf32> to vector<1x32xf32>
    %c0_5 = arith.constant 0 : index
    %c0_6 = arith.constant 0 : index
    %11 = vector.load %arg4[%c0_5, %c0_6] : memref<32x96xf32, #tpu.memory_space<vmem>>, vector<32x96xf32>
    %cst = arith.constant dense<0.000000e+00> : vector<16x96xf32>
    %12 = tpu.matmul %0, %11, %cst {dimension_numbers = #tpu.dot_dimension_numbers<[1], [0], [0], [1], [0, 0, 1, 1], [], []>} : vector<16x32xf32>, vector<32x96xf32>, vector<16x96xf32> -> vector<16x96xf32>
    %13 = vector.broadcast %3 : vector<1x96xf32> to vector<16x96xf32>
    %14 = arith.addf %12, %13 : vector<16x96xf32>
    %15 = vector.extract_strided_slice %14 {offsets = [0, 0], sizes = [16, 32], strides = [1, 1]} : vector<16x96xf32> to vector<16x32xf32>
    %16 = vector.extract_strided_slice %14 {offsets = [0, 32], sizes = [16, 32], strides = [1, 1]} : vector<16x96xf32> to vector<16x32xf32>
    %17 = vector.extract_strided_slice %14 {offsets = [0, 64], sizes = [16, 32], strides = [1, 1]} : vector<16x96xf32> to vector<16x32xf32>
    %18 = tpu.concatenate %15, %15, %15, %15 in 0 : vector<16x32xf32>, vector<16x32xf32>, vector<16x32xf32>, vector<16x32xf32> -> vector<64x32xf32>
    %19 = arith.mulf %18, %1 : vector<64x32xf32>
    %cst_7 = arith.constant dense<0.000000e+00> : vector<64x16xf32>
    %20 = tpu.matmul %19, %16, %cst_7 {dimension_numbers = #tpu.dot_dimension_numbers<[1], [1], [0], [0], [0, 0, 1, 0], [], []>} : vector<64x32xf32>, vector<16x32xf32>, vector<64x16xf32> -> vector<64x16xf32>
    %c0_8 = arith.constant 0 : index
    %c0_9 = arith.constant 0 : index
    %21 = vector.load %arg2[%c0_8, %c0_9] : memref<64x16xf32, #tpu.memory_space<vmem>>, vector<64x16xf32>
    %22 = arith.addf %20, %21 : vector<64x16xf32>
    %cst_10 = arith.constant dense<0xFF800000> : vector<64xf32>
    %23 = vector.multi_reduction <maximumf>, %22, %cst_10 [1] : vector<64x16xf32> to vector<64xf32>
    %24 = vector.shape_cast %23 : vector<64xf32> to vector<64x1xf32>
    %25 = vector.broadcast %24 : vector<64x1xf32> to vector<64x16xf32>
    %26 = arith.subf %22, %25 : vector<64x16xf32>
    %27 = math.exp %26 : vector<64x16xf32>
    %cst_11 = arith.constant dense<0.000000e+00> : vector<64xf32>
    %28 = vector.multi_reduction <add>, %27, %cst_11 [1] : vector<64x16xf32> to vector<64xf32>
    %29 = vector.shape_cast %28 : vector<64xf32> to vector<64x1xf32>
    %30 = tpu.reciprocal %29 {approx = true} : vector<64x1xf32> -> vector<64x1xf32>
    %31 = vector.broadcast %30 : vector<64x1xf32> to vector<64x16xf32>
    %32 = arith.mulf %27, %31 : vector<64x16xf32>
    %cst_12 = arith.constant dense<0.000000e+00> : vector<64x32xf32>
    %33 = tpu.matmul %32, %17, %cst_12 {dimension_numbers = #tpu.dot_dimension_numbers<[1], [0], [0], [1], [0, 0, 1, 1], [], []>} : vector<64x16xf32>, vector<16x32xf32>, vector<64x32xf32> -> vector<64x32xf32>
    %34 = arith.mulf %33, %1 : vector<64x32xf32>
    %35 = vector.extract_strided_slice %34 {offsets = [0, 0], sizes = [16, 32], strides = [1, 1]} : vector<64x32xf32> to vector<16x32xf32>
    %36 = vector.extract_strided_slice %34 {offsets = [16, 0], sizes = [16, 32], strides = [1, 1]} : vector<64x32xf32> to vector<16x32xf32>
    %37 = arith.addf %35, %36 : vector<16x32xf32>
    %38 = vector.extract_strided_slice %34 {offsets = [32, 0], sizes = [16, 32], strides = [1, 1]} : vector<64x32xf32> to vector<16x32xf32>
    %39 = arith.addf %37, %38 : vector<16x32xf32>
    %40 = vector.extract_strided_slice %34 {offsets = [48, 0], sizes = [16, 32], strides = [1, 1]} : vector<64x32xf32> to vector<16x32xf32>
    %41 = arith.addf %39, %40 : vector<16x32xf32>
    %42 = tpu.concatenate %15, %41 in 1 : vector<16x32xf32>, vector<16x32xf32> -> vector<16x64xf32>
    %c0_13 = arith.constant 0 : index
    %c0_14 = arith.constant 0 : index
    %43 = vector.load %arg5[%c0_13, %c0_14] : memref<64x64xf32, #tpu.memory_space<vmem>>, vector<64x64xf32>
    %cst_15 = arith.constant dense<0.000000e+00> : vector<16x64xf32>
    %44 = tpu.matmul %42, %43, %cst_15 {dimension_numbers = #tpu.dot_dimension_numbers<[1], [0], [0], [1], [0, 0, 1, 1], [], []>} : vector<16x64xf32>, vector<64x64xf32>, vector<16x64xf32> -> vector<16x64xf32>
    %45 = vector.broadcast %4 : vector<1x64xf32> to vector<16x64xf32>
    %46 = arith.addf %44, %45 : vector<16x64xf32>
    %47 = vector.extract_strided_slice %46 {offsets = [0, 0], sizes = [16, 32], strides = [1, 1]} : vector<16x64xf32> to vector<16x32xf32>
    %48 = vector.extract_strided_slice %46 {offsets = [0, 32], sizes = [16, 32], strides = [1, 1]} : vector<16x64xf32> to vector<16x32xf32>
    %49 = arith.negf %48 : vector<16x32xf32>
    %50 = math.exp %49 : vector<16x32xf32>
    %cst_16 = arith.constant 1.000000e+00 : f32
    %51 = vector.broadcast %cst_16 : f32 to vector<16x32xf32>
    %52 = arith.addf %51, %50 : vector<16x32xf32>
    %53 = arith.divf %51, %52 : vector<16x32xf32>
    %54 = arith.mulf %47, %53 : vector<16x32xf32>
    %55 = arith.addf %0, %54 : vector<16x32xf32>
    %cst_17 = arith.constant dense<0.000000e+00> : vector<16xf32>
    %56 = vector.multi_reduction <add>, %55, %cst_17 [1] : vector<16x32xf32> to vector<16xf32>
    %57 = vector.shape_cast %56 : vector<16xf32> to vector<16x1xf32>
    %cst_18 = arith.constant 3.200000e+01 : f32
    %58 = vector.broadcast %cst_18 : f32 to vector<16x1xf32>
    %59 = arith.divf %57, %58 : vector<16x1xf32>
    %60 = vector.broadcast %59 : vector<16x1xf32> to vector<16x32xf32>
    %61 = arith.subf %55, %60 : vector<16x32xf32>
    %62 = arith.mulf %61, %61 : vector<16x32xf32>
    %cst_19 = arith.constant dense<0.000000e+00> : vector<16xf32>
    %63 = vector.multi_reduction <add>, %62, %cst_19 [1] : vector<16x32xf32> to vector<16xf32>
    %64 = vector.shape_cast %63 : vector<16xf32> to vector<16x1xf32>
    %cst_20 = arith.constant 0.0322580636 : f32
    %65 = vector.broadcast %cst_20 : f32 to vector<16x1xf32>
    %66 = arith.mulf %64, %65 : vector<16x1xf32>
    %67 = math.sqrt %66 : vector<16x1xf32>
    %68 = vector.broadcast %7 : vector<1x32xf32> to vector<16x32xf32>
    %69 = arith.mulf %68, %61 : vector<16x32xf32>
    %cst_21 = arith.constant 9.99999997E-7 : f32
    %70 = vector.broadcast %cst_21 : f32 to vector<16x1xf32>
    %71 = arith.addf %67, %70 : vector<16x1xf32>
    %72 = tpu.reciprocal %71 {approx = true} : vector<16x1xf32> -> vector<16x1xf32>
    %73 = vector.broadcast %72 : vector<16x1xf32> to vector<16x32xf32>
    %74 = arith.mulf %69, %73 : vector<16x32xf32>
    %75 = vector.broadcast %8 : vector<1x32xf32> to vector<16x32xf32>
    %76 = arith.addf %74, %75 : vector<16x32xf32>
    %c0_22 = arith.constant 0 : index
    %c0_23 = arith.constant 0 : index
    %77 = vector.load %arg6[%c0_22, %c0_23] : memref<32x64xf32, #tpu.memory_space<vmem>>, vector<32x64xf32>
    %cst_24 = arith.constant dense<0.000000e+00> : vector<16x64xf32>
    %78 = tpu.matmul %76, %77, %cst_24 {dimension_numbers = #tpu.dot_dimension_numbers<[1], [0], [0], [1], [0, 0, 1, 1], [], []>} : vector<16x32xf32>, vector<32x64xf32>, vector<16x64xf32> -> vector<16x64xf32>
    %79 = vector.broadcast %5 : vector<1x64xf32> to vector<16x64xf32>
    %80 = arith.addf %78, %79 : vector<16x64xf32>
    %cst_25 = arith.constant 0.000000e+00 : f32
    %81 = vector.broadcast %cst_25 : f32 to vector<16x64xf32>
    %82 = arith.maximumf %80, %81 : vector<16x64xf32>
    %c0_26 = arith.constant 0 : index
    %c0_27 = arith.constant 0 : index
    %83 = vector.load %arg7[%c0_26, %c0_27] : memref<64x32xf32, #tpu.memory_space<vmem>>, vector<64x32xf32>
    %cst_28 = arith.constant dense<0.000000e+00> : vector<16x32xf32>
    %84 = tpu.matmul %82, %83, %cst_28 {dimension_numbers = #tpu.dot_dimension_numbers<[1], [0], [0], [1], [0, 0, 1, 1], [], []>} : vector<16x64xf32>, vector<64x32xf32>, vector<16x32xf32> -> vector<16x32xf32>
    %85 = vector.broadcast %6 : vector<1x32xf32> to vector<16x32xf32>
    %86 = arith.addf %84, %85 : vector<16x32xf32>
    %87 = arith.addf %76, %86 : vector<16x32xf32>
    %cst_29 = arith.constant dense<0.000000e+00> : vector<16xf32>
    %88 = vector.multi_reduction <add>, %87, %cst_29 [1] : vector<16x32xf32> to vector<16xf32>
    %89 = vector.shape_cast %88 : vector<16xf32> to vector<16x1xf32>
    %cst_30 = arith.constant 3.200000e+01 : f32
    %90 = vector.broadcast %cst_30 : f32 to vector<16x1xf32>
    %91 = arith.divf %89, %90 : vector<16x1xf32>
    %92 = vector.broadcast %91 : vector<16x1xf32> to vector<16x32xf32>
    %93 = arith.subf %87, %92 : vector<16x32xf32>
    %94 = arith.mulf %93, %93 : vector<16x32xf32>
    %cst_31 = arith.constant dense<0.000000e+00> : vector<16xf32>
    %95 = vector.multi_reduction <add>, %94, %cst_31 [1] : vector<16x32xf32> to vector<16xf32>
    %96 = vector.shape_cast %95 : vector<16xf32> to vector<16x1xf32>
    %cst_32 = arith.constant 0.0322580636 : f32
    %97 = vector.broadcast %cst_32 : f32 to vector<16x1xf32>
    %98 = arith.mulf %96, %97 : vector<16x1xf32>
    %99 = math.sqrt %98 : vector<16x1xf32>
    %100 = vector.broadcast %9 : vector<1x32xf32> to vector<16x32xf32>
    %101 = arith.mulf %100, %93 : vector<16x32xf32>
    %cst_33 = arith.constant 9.99999997E-7 : f32
    %102 = vector.broadcast %cst_33 : f32 to vector<16x1xf32>
    %103 = arith.addf %99, %102 : vector<16x1xf32>
    %104 = tpu.reciprocal %103 {approx = true} : vector<16x1xf32> -> vector<16x1xf32>
    %105 = vector.broadcast %104 : vector<16x1xf32> to vector<16x32xf32>
    %106 = arith.mulf %101, %105 : vector<16x32xf32>
    %107 = vector.broadcast %10 : vector<1x32xf32> to vector<16x32xf32>
    %108 = arith.addf %106, %107 : vector<16x32xf32>
    %c0_34 = arith.constant 0 : index
    %c0_35 = arith.constant 0 : index
    %109 = vector.load %arg9[%c0_34, %c0_35] : memref<16x32xf32, #tpu.memory_space<vmem>>, vector<16x32xf32>
    tpu.vector_store %arg9[%c0_34, %c0_35], %108 {strides = array<i32>} : memref<16x32xf32, #tpu.memory_space<vmem>>, vector<16x32xf32>,
    return
  }
  func.func @transform_0(%arg0: i32) -> (i32, i32) {
    %c0_i32 = arith.constant 0 : i32
    %c0_i32_0 = arith.constant 0 : i32
    %c0_i32_1 = arith.constant 0 : i32
    return %c0_i32, %c0_i32_0 : i32, i32
  }
  func.func @transform_1(%arg0: i32) -> (i32, i32) {
    %c0_i32 = arith.constant 0 : i32
    %c0_i32_0 = arith.constant 0 : i32
    %c0_i32_1 = arith.constant 0 : i32
    return %c0_i32, %c0_i32_0 : i32, i32
  }
  func.func @transform_2(%arg0: i32) -> (i32, i32) {
    %c0_i32 = arith.constant 0 : i32
    %c0_i32_0 = arith.constant 0 : i32
    %c0_i32_1 = arith.constant 0 : i32
    return %c0_i32, %c0_i32_0 : i32, i32
  }
  func.func @transform_3(%arg0: i32) -> (i32, i32) {
    %c0_i32 = arith.constant 0 : i32
    %c0_i32_0 = arith.constant 0 : i32
    %c0_i32_1 = arith.constant 0 : i32
    return %c0_i32, %c0_i32_0 : i32, i32
  }
  func.func @transform_4(%arg0: i32) -> (i32, i32) {
    %c0_i32 = arith.constant 0 : i32
    %c0_i32_0 = arith.constant 0 : i32
    %c0_i32_1 = arith.constant 0 : i32
    return %c0_i32, %c0_i32_0 : i32, i32
  }
  func.func @transform_5(%arg0: i32) -> (i32, i32) {
    %c0_i32 = arith.constant 0 : i32
    %c0_i32_0 = arith.constant 0 : i32
    %c0_i32_1 = arith.constant 0 : i32
    return %c0_i32, %c0_i32_0 : i32, i32
  }
  func.func @transform_6(%arg0: i32) -> (i32, i32) {
    %c0_i32 = arith.constant 0 : i32
    %c0_i32_0 = arith.constant 0 : i32
    %c0_i32_1 = arith.constant 0 : i32
    return %c0_i32, %c0_i32_0 : i32, i32
  }
  func.func @transform_7(%arg0: i32) -> (i32, i32) {
    %c0_i32 = arith.constant 0 : i32
    %c0_i32_0 = arith.constant 0 : i32
    %c0_i32_1 = arith.constant 0 : i32
    return %c0_i32, %c0_i32_0 : i32, i32
  }
  func.func @transform_8(%arg0: i32) -> (i32, i32) {
    %c0_i32 = arith.constant 0 : i32
    %c0_i32_0 = arith.constant 0 : i32
    %c0_i32_1 = arith.constant 0 : i32
    return %c0_i32, %c0_i32_0 : i32, i32
  }
}

</mosaic_0001>

<llo_original>
// kernel: tpu_custom_call.1
$region0: #{tpu_custom_call.1}
  #allocation0 [shape = 'u32[]', space=smem, size = 0x4, offset = 0x4, fixed_abs, tag = 'smem constant byte address 0x4 - core index']
  #allocation1 [shape = 'u32[72,128]{1,0:T(1,128)}', space=vmem, size = 0x9000, scoped, tag = 'internal scratch']
  %s0 = inlined_call_operand.vmem [shape: f32[16,32], index: 0, kind: input, shape index: {}]
  %s1 = inlined_call_operand.vmem [shape: f32[64,16], index: 1, kind: input, shape index: {}]
  %s2 = inlined_call_operand.vmem [shape: f32[64,32], index: 2, kind: input, shape index: {}]
  %s3 = inlined_call_operand.vmem [shape: f32[32,96], index: 3, kind: input, shape index: {}]
  %s4 = inlined_call_operand.vmem [shape: f32[64,64], index: 4, kind: input, shape index: {}]
  %s5 = inlined_call_operand.vmem [shape: f32[32,64], index: 5, kind: input, shape index: {}]
  %s6 = inlined_call_operand.vmem [shape: f32[64,32], index: 6, kind: input, shape index: {}]
  %s7 = inlined_call_operand.vmem [shape: f32[8,96], index: 7, kind: input, shape index: {}]
  %s8 = inlined_call_operand.hbm [shape: f32[16,32], index: 8, kind: output, shape index: {}]
  %s9 = sld [smem:[#allocation0]]
  $region42: #{tpu_custom_call.1} parent=0
    _
  %s11 = ssub.s32 1, %s9
  %s12 = scalar_select 0, %s11, %s9
  $region1: #{tpu_custom_call.1} parent=0
    #allocation2 [shape = 'u8[8192]{0}', space=vmem, size = 0x2000, scoped, tag = 'output window, operand 0, single buffered']
    #allocation3 [shape = 's32[1]{0}', space=sflag, size = 0x4, scoped, tag = 'scoped memory for tpu_custom_call.1']
    %13 = vsyncpa [#allocation3], 0
    // Predicated region
    $region2: #{tpu_custom_call.1} parent=1 // pred_check
      _
    $region3: #{tpu_custom_call.1} parent=1 // pred_check_branch
      %15 = sbr.rel (0) target = $region5
    $region4: #{tpu_custom_call.1} parent=1 // pred_region
      _
    $region5: #{tpu_custom_call.1} parent=1 // pred_fallthru
      _
    // Predicated region
    $region6: #{tpu_custom_call.1} parent=1 // pred_check
      _
    $region7: #{tpu_custom_call.1} parent=1 // pred_check_branch
      %17 = sbr.rel (0) target = $region9
    $region8: #{tpu_custom_call.1} parent=1 // pred_region
      _
    $region9: #{tpu_custom_call.1} parent=1 // pred_fallthru
      _
    // Predicated region
    $region10: #{tpu_custom_call.1} parent=1 // pred_check
      _
    $region11: #{tpu_custom_call.1} parent=1 // pred_check_branch
      %19 = sbr.rel (0) target = $region13
    $region12: #{tpu_custom_call.1} parent=1 // pred_region
      _
    $region13: #{tpu_custom_call.1} parent=1 // pred_fallthru
      _
    // Predicated region
    $region14: #{tpu_custom_call.1} parent=1 // pred_check
      _
    $region15: #{tpu_custom_call.1} parent=1 // pred_check_branch
      %21 = sbr.rel (0) target = $region17
    $region16: #{tpu_custom_call.1} parent=1 // pred_region
      _
    $region17: #{tpu_custom_call.1} parent=1 // pred_fallthru
      _
    // Predicated region
    $region18: #{tpu_custom_call.1} parent=1 // pred_check
      _
    $region19: #{tpu_custom_call.1} parent=1 // pred_check_branch
      %23 = sbr.rel (0) target = $region21
    $region20: #{tpu_custom_call.1} parent=1 // pred_region
      _
    $region21: #{tpu_custom_call.1} parent=1 // pred_fallthru
      _
    // Predicated region
    $region22: #{tpu_custom_call.1} parent=1 // pred_check
      _
    $region23: #{tpu_custom_call.1} parent=1 // pred_check_branch
      %25 = sbr.rel (0) target = $region25
    $region24: #{tpu_custom_call.1} parent=1 // pred_region
      _
    $region25: #{tpu_custom_call.1} parent=1 // pred_fallthru
      _
    // Predicated region
    $region26: #{tpu_custom_call.1} parent=1 // pred_check
      _
    $region27: #{tpu_custom_call.1} parent=1 // pred_check_branch
      %27 = sbr.rel (0) target = $region29
    $region28: #{tpu_custom_call.1} parent=1 // pred_region
      _
    $region29: #{tpu_custom_call.1} parent=1 // pred_fallthru
      _
    // Predicated region
    $region30: #{tpu_custom_call.1} parent=1 // pred_check
      _
    $region31: #{tpu_custom_call.1} parent=1 // pred_check_branch
      %29 = sbr.rel (0) target = $region33
    $region32: #{tpu_custom_call.1} parent=1 // pred_region
      _
    $region33: #{tpu_custom_call.1} parent=1 // pred_fallthru
      _
    %v30 = vld [vmem:[%s0] sm:$0xff]
    %v31 = vld [vmem:[%s0 + $0x8] sm:$0xff]
    %v32 = vld [vmem:[%s2] sm:$0xff]
    %v33 = vld [vmem:[%s2 + $0x8] sm:$0xff]
    %v34 = vld [vmem:[%s2 + $0x10] sm:$0xff]
    %v35 = vld [vmem:[%s2 + $0x18] sm:$0xff]
    %v36 = vld [vmem:[%s2 + $0x20] sm:$0xff]
    %v37 = vld [vmem:[%s2 + $0x28] sm:$0xff]
    %v38 = vld [vmem:[%s2 + $0x30] sm:$0xff]
    %v39 = vld [vmem:[%s2 + $0x38] sm:$0xff]
    %v40 = vld [vmem:[%s7] sm:$0xff]
    %v41 = vld [vmem:[%s3] sm:$0xff]
    %v42 = vld [vmem:[%s3 + $0x8] sm:$0xff]
    %v43 = vld [vmem:[%s3 + $0x10] sm:$0xff]
    %v44 = vld [vmem:[%s3 + $0x18] sm:$0xff]
    %v45 = vperm.slane %v40, 0
    %vm46 = vcmask 261120
    %v48 = vsel %vm46, %v30, 0
    %v51 = vsel %vm46, %v31, 0
    %53 = vmatpush.msra.mxu0 0.0
    %54 = vmatpush.msra.mxu0 0.0
    %55 = vmatpush.msra.mxu0 0.0
    %56 = vmatpush.msra.mxu0 0.0
    %57 = vmatpush.msra.mxu0 0.0
    %58 = vmatpush.msra.mxu0 0.0
    %59 = vmatpush.msra.mxu0 0.0
    %60 = vmatpush.msra.mxu0 0.0
    %61 = vmatpush.msra.mxu0 0.0
    %62 = vmatpush.msra.mxu0 0.0
    %63 = vmatpush.msra.mxu0 0.0
    %64 = vmatpush.msra.mxu0 0.0
    %65 = vmatpush.msra.mxu0 %v44
    %66 = vmatpush.msra.mxu0 %v43
    %67 = vmatpush.msra.mxu0 %v42
    %68 = vmatpush.msra.mxu0 %v41
    %69 = vmatmul.f32.gmra.mxu0 %v48
    %v70 = vpop.f32.mrf.mxu0
    %v71 = vadd.f32 %v45, %v70
    %72 = vmatmul.f32.gmra.mxu0 %v51
    %v73 = vpop.f32.mrf.mxu0
    %v74 = vadd.f32 %v45, %v73
    %75 = vdwg.mxu0
    %v76 = vmul.f32 %v71, %v32
    %v77 = vmul.f32 %v74, %v33
    %v78 = vmul.f32 %v71, %v34
    %v79 = vmul.f32 %v74, %v35
    %v80 = vmul.f32 %v71, %v36
    %v81 = vmul.f32 %v74, %v37
    %v82 = vmul.f32 %v71, %v38
    %v83 = vmul.f32 %v74, %v39
    %v84 = vld [vmem:[%s1] sm:$0xff]
    %v85 = vld [vmem:[%s1 + $0x8] sm:$0xff]
    %v86 = vld [vmem:[%s1 + $0x10] sm:$0xff]
    %v87 = vld [vmem:[%s1 + $0x18] sm:$0xff]
    %v88 = vld [vmem:[%s1 + $0x20] sm:$0xff]
    %v89 = vld [vmem:[%s1 + $0x28] sm:$0xff]
    %v90 = vld [vmem:[%s1 + $0x30] sm:$0xff]
    %v91 = vld [vmem:[%s1 + $0x38] sm:$0xff]
    %94 = vrot.lane.b32.xlu0 %v71, 96
    %v95 = vpop.permute.xlu0 %94
    %96 = vrot.lane.b32.xlu0 %v74, 96
    %v97 = vpop.permute.xlu0 %96
    %v99 = vsel %vm46, %v76, 0
    %v102 = vsel %vm46, %v77, 0
    %v105 = vsel %vm46, %v78, 0
    %v108 = vsel %vm46, %v79, 0
    %v111 = vsel %vm46, %v80, 0
    %v114 = vsel %vm46, %v81, 0
    %v117 = vsel %vm46, %v82, 0
    %v120 = vsel %vm46, %v83, 0
    %v122 = vsel %vm46, %v95, 0
    %v124 = vsel %vm46, %v97, 0
    %126 = vmatpush.xpose.msra.mxu0 0.0
    %127 = vmatpush.xpose.msra.mxu0 0.0
    %128 = vmatpush.xpose.msra.mxu0 0.0
    %129 = vmatpush.xpose.msra.mxu0 0.0
    %130 = vmatpush.xpose.msra.mxu0 0.0
    %131 = vmatpush.xpose.msra.mxu0 0.0
    %132 = vmatpush.xpose.msra.mxu0 0.0
    %133 = vmatpush.xpose.msra.mxu0 0.0
    %134 = vmatpush.xpose.msra.mxu0 0.0
    %135 = vmatpush.xpose.msra.mxu0 0.0
    %136 = vmatpush.xpose.msra.mxu0 0.0
    %137 = vmatpush.xpose.msra.mxu0 0.0
    %138 = vmatpush.xpose.msra.mxu0 0.0
    %139 = vmatpush.xpose.msra.mxu0 0.0
    %140 = vmatpush.xpose.msra.mxu0 %v124
    %141 = vmatpush.xpose.msra.mxu0 %v122
    %142 = vmatmul.f32.gmra.mxu0 %v99
    %v143 = vpop.f32.mrf.mxu0
    %v144 = vadd.f32 %v84, %v143
    %145 = vmatmul.f32.gmra.mxu0 %v102
    %v146 = vpop.f32.mrf.mxu0
    %v147 = vadd.f32 %v85, %v146
    %148 = vmatmul.f32.gmra.mxu0 %v105
    %v149 = vpop.f32.mrf.mxu0
    %v150 = vadd.f32 %v86, %v149
    %151 = vmatmul.f32.gmra.mxu0 %v108
    %v152 = vpop.f32.mrf.mxu0
    %v153 = vadd.f32 %v87, %v152
    %154 = vmatmul.f32.gmra.mxu0 %v111
    %v155 = vpop.f32.mrf.mxu0
    %v156 = vadd.f32 %v88, %v155
    %157 = vmatmul.f32.gmra.mxu0 %v114
    %v158 = vpop.f32.mrf.mxu0
    %v159 = vadd.f32 %v89, %v158
    %160 = vmatmul.f32.gmra.mxu0 %v117
    %v161 = vpop.f32.mrf.mxu0
    %v162 = vadd.f32 %v90, %v161
    %163 = vmatmul.f32.gmra.mxu0 %v120
    %v164 = vpop.f32.mrf.mxu0
    %v165 = vadd.f32 %v91, %v164
    %166 = vdwg.mxu0
    %vm167 = vcmask 130048
    %v168 = vsel %vm167, %v144, -inf
    %169 = vmax.xlane.f32.xlu0 %v168
    %v170 = vpop.xlane.xlu0 %169
    %v171 = vsel %vm167, %v147, -inf
    %172 = vmax.xlane.f32.xlu0 %v171
    %v173 = vpop.xlane.xlu0 %172
    %v174 = vsel %vm167, %v150, -inf
    %175 = vmax.xlane.f32.xlu0 %v174
    %v176 = vpop.xlane.xlu0 %175
    %v177 = vsel %vm167, %v153, -inf
    %178 = vmax.xlane.f32.xlu0 %v177
    %v179 = vpop.xlane.xlu0 %178
    %v180 = vsel %vm167, %v156, -inf
    %181 = vmax.xlane.f32.xlu0 %v180
    %v182 = vpop.xlane.xlu0 %181
    %v183 = vsel %vm167, %v159, -inf
    %184 = vmax.xlane.f32.xlu0 %v183
    %v185 = vpop.xlane.xlu0 %184
    %v186 = vsel %vm167, %v162, -inf
    %187 = vmax.xlane.f32.xlu0 %v186
    %v188 = vpop.xlane.xlu0 %187
    %v189 = vsel %vm167, %v165, -inf
    %190 = vmax.xlane.f32.xlu0 %v189
    %v191 = vpop.xlane.xlu0 %190
    %v192 = vsub.f32 %v144, %v170
    %v193 = vsub.f32 %v147, %v173
    %v194 = vsub.f32 %v150, %v176
    %v195 = vsub.f32 %v153, %v179
    %v196 = vsub.f32 %v156, %v182
    %v197 = vsub.f32 %v159, %v185
    %v198 = vsub.f32 %v162, %v188
    %v199 = vsub.f32 %v165, %v191
    %v200 = vmul.f32 %v192, 1.442695
    %v201 = vpow.pop %v200
    %v202 = vmul.f32 %v193, 1.442695
    %v203 = vpow.pop %v202
    %v204 = vmul.f32 %v194, 1.442695
    %v205 = vpow.pop %v204
    %v206 = vmul.f32 %v195, 1.442695
    %v207 = vpow.pop %v206
    %v208 = vmul.f32 %v196, 1.442695
    %v209 = vpow.pop %v208
    %v210 = vmul.f32 %v197, 1.442695
    %v211 = vpow.pop %v210
    %v212 = vmul.f32 %v198, 1.442695
    %v213 = vpow.pop %v212
    %v214 = vmul.f32 %v199, 1.442695
    %v215 = vpow.pop %v214
    %v216 = vsel %vm167, %v201, 0.0
    %217 = vadd.xlane.f32.xlu0 %v216
    %v218 = vpop.xlane.xlu0 %217
    %v219 = vsel %vm167, %v203, 0.0
    %220 = vadd.xlane.f32.xlu0 %v219
    %v221 = vpop.xlane.xlu0 %220
    %v222 = vsel %vm167, %v205, 0.0
    %223 = vadd.xlane.f32.xlu0 %v222
    %v224 = vpop.xlane.xlu0 %223
    %v225 = vsel %vm167, %v207, 0.0
    %226 = vadd.xlane.f32.xlu0 %v225
    %v227 = vpop.xlane.xlu0 %226
    %v228 = vsel %vm167, %v209, 0.0
    %229 = vadd.xlane.f32.xlu0 %v228
    %v230 = vpop.xlane.xlu0 %229
    %v231 = vsel %vm167, %v211, 0.0
    %232 = vadd.xlane.f32.xlu0 %v231
    %v233 = vpop.xlane.xlu0 %232
    %v234 = vsel %vm167, %v213, 0.0
    %235 = vadd.xlane.f32.xlu0 %v234
    %v236 = vpop.xlane.xlu0 %235
    %v237 = vsel %vm167, %v215, 0.0
    %238 = vadd.xlane.f32.xlu0 %v237
    %v239 = vpop.xlane.xlu0 %238
    %v240 = vrcp.pop %v218
    %v241 = vrcp.pop %v221
    %v242 = vrcp.pop %v224
    %v243 = vrcp.pop %v227
    %v244 = vrcp.pop %v230
    %v245 = vrcp.pop %v233
    %v246 = vrcp.pop %v236
    %v247 = vrcp.pop %v239
    %v248 = vmul.f32 %v201, %v240
    %v249 = vmul.f32 %v203, %v241
    %v250 = vmul.f32 %v205, %v242
    %v251 = vmul.f32 %v207, %v243
    %v252 = vmul.f32 %v209, %v244
    %v253 = vmul.f32 %v211, %v245
    %v254 = vmul.f32 %v213, %v246
    %v255 = vmul.f32 %v215, %v247
    %256 = vrot.lane.b32.xlu0 %v71, 64
    %v257 = vpop.permute.xlu0 %256
    %258 = vrot.lane.b32.xlu0 %v74, 64
    %v259 = vpop.permute.xlu0 %258
    %v263 = vsel %vm167, %v248, 0
    %v266 = vsel %vm167, %v249, 0
    %v269 = vsel %vm167, %v250, 0
    %v272 = vsel %vm167, %v251, 0
    %v275 = vsel %vm167, %v252, 0
    %v278 = vsel %vm167, %v253, 0
    %v281 = vsel %vm167, %v254, 0
    %v284 = vsel %vm167, %v255, 0
    %286 = vmatpush.msra.mxu0 0.0
    %287 = vmatpush.msra.mxu0 0.0
    %288 = vmatpush.msra.mxu0 0.0
    %289 = vmatpush.msra.mxu0 0.0
    %290 = vmatpush.msra.mxu0 0.0
    %291 = vmatpush.msra.mxu0 0.0
    %292 = vmatpush.msra.mxu0 0.0
    %293 = vmatpush.msra.mxu0 0.0
    %294 = vmatpush.msra.mxu0 0.0
    %295 = vmatpush.msra.mxu0 0.0
    %296 = vmatpush.msra.mxu0 0.0
    %297 = vmatpush.msra.mxu0 0.0
    %298 = vmatpush.msra.mxu0 0.0
    %299 = vmatpush.msra.mxu0 0.0
    %300 = vmatpush.msra.mxu0 %v259
    %301 = vmatpush.msra.mxu0 %v257
    %302 = vmatmul.f32.gmra.mxu0 %v263
    %v303 = vpop.f32.mrf.mxu0
    %v304 = vadd.f32 0.0, %v303
    %305 = vmatmul.f32.gmra.mxu0 %v266
    %v306 = vpop.f32.mrf.mxu0
    %v307 = vadd.f32 0.0, %v306
    %308 = vmatmul.f32.gmra.mxu0 %v269
    %v309 = vpop.f32.mrf.mxu0
    %v310 = vadd.f32 0.0, %v309
    %311 = vmatmul.f32.gmra.mxu0 %v272
    %v312 = vpop.f32.mrf.mxu0
    %v313 = vadd.f32 0.0, %v312
    %314 = vmatmul.f32.gmra.mxu0 %v275
    %v315 = vpop.f32.mrf.mxu0
    %v316 = vadd.f32 0.0, %v315
    %317 = vmatmul.f32.gmra.mxu0 %v278
    %v318 = vpop.f32.mrf.mxu0
    %v319 = vadd.f32 0.0, %v318
    %320 = vmatmul.f32.gmra.mxu0 %v281
    %v321 = vpop.f32.mrf.mxu0
    %v322 = vadd.f32 0.0, %v321
    %323 = vmatmul.f32.gmra.mxu0 %v284
    %v324 = vpop.f32.mrf.mxu0
    %v325 = vadd.f32 0.0, %v324
    %326 = vdwg.mxu0
    %v327 = vmul.f32 %v304, %v32
    %v328 = vmul.f32 %v307, %v33
    %v329 = vmul.f32 %v310, %v34
    %v330 = vmul.f32 %v313, %v35
    %v331 = vmul.f32 %v316, %v36
    %v332 = vmul.f32 %v319, %v37
    %v333 = vmul.f32 %v322, %v38
    %v334 = vmul.f32 %v325, %v39
    %v335 = vadd.f32 %v327, %v329
    %v336 = vadd.f32 %v328, %v330
    %v337 = vadd.f32 %v335, %v331
    %v338 = vadd.f32 %v336, %v332
    %v339 = vadd.f32 %v337, %v333
    %v340 = vadd.f32 %v338, %v334
    %343 = vrot.lane.b32.xlu0 %v339, 32
    %v344 = vpop.permute.xlu0 %343
    %345 = vrot.lane.b32.xlu0 %v340, 32
    %v346 = vpop.permute.xlu0 %345
    %v349 = vsel %vm46, %v71, %v344
    %v350 = vsel %vm46, %v74, %v346
    %v351 = vld [vmem:[%s4] sm:$0xff]
    %v352 = vld [vmem:[%s4 + $0x8] sm:$0xff]
    %v353 = vld [vmem:[%s4 + $0x10] sm:$0xff]
    %v354 = vld [vmem:[%s4 + $0x18] sm:$0xff]
    %v355 = vld [vmem:[%s4 + $0x20] sm:$0xff]
    %v356 = vld [vmem:[%s4 + $0x28] sm:$0xff]
    %v357 = vld [vmem:[%s4 + $0x30] sm:$0xff]
    %v358 = vld [vmem:[%s4 + $0x38] sm:$0xff]
    %v359 = vperm.slane %v40, 1
    %vm360 = vcmask 523264
    %v362 = vsel %vm360, %v349, 0
    %v365 = vsel %vm360, %v350, 0
    %367 = vmatpush.msra.mxu0 0.0
    %368 = vmatpush.msra.mxu0 0.0
    %369 = vmatpush.msra.mxu0 0.0
    %370 = vmatpush.msra.mxu0 0.0
    %371 = vmatpush.msra.mxu0 0.0
    %372 = vmatpush.msra.mxu0 0.0
    %373 = vmatpush.msra.mxu0 0.0
    %374 = vmatpush.msra.mxu0 0.0
    %375 = vmatpush.msra.mxu0 %v358
    %376 = vmatpush.msra.mxu0 %v357
    %377 = vmatpush.msra.mxu0 %v356
    %378 = vmatpush.msra.mxu0 %v355
    %379 = vmatpush.msra.mxu0 %v354
    %380 = vmatpush.msra.mxu0 %v353
    %381 = vmatpush.msra.mxu0 %v352
    %382 = vmatpush.msra.mxu0 %v351
    %383 = vmatmul.f32.gmra.mxu0 %v362
    %v384 = vpop.f32.mrf.mxu0
    %v385 = vadd.f32 %v359, %v384
    %386 = vmatmul.f32.gmra.mxu0 %v365
    %v387 = vpop.f32.mrf.mxu0
    %v388 = vadd.f32 %v359, %v387
    %389 = vdwg.mxu0
    %v390 = vxor.u32 %v385, 2147483648
    %v391 = vxor.u32 %v388, 2147483648
    %v392 = vmul.f32 %v390, 1.442695
    %v393 = vpow.pop %v392
    %v394 = vmul.f32 %v391, 1.442695
    %v395 = vpow.pop %v394
    %v396 = vadd.f32 %v393, 1.0
    %v397 = vadd.f32 %v395, 1.0
    %v398 = vrcp.pop %v396
    %v399 = vmul.f32 %v396, %v398
    %v400 = vsub.f32 1.0, %v399
    %v401 = vmul.f32 %v398, %v400
    %v402 = vadd.f32 %v398, %v401
    %vm403 = vweird.f32 %v396
    %vm404 = vweird.f32 %v398
    %vm405 = vmor %vm403, %vm404
    %v406 = vsel %vm405, %v398, %v402
    %v407 = vand.u32 2147483647, %v396
    %vm408 = vcmp.eq.f32.partialorder %v407, 8.507059e+37
    %v409 = vand.u32 %v396, 2147483648
    %v410 = vor.u32 1.1754944e-38, %v409
    %v411 = vsel %vm408, %v410, %v406
    %v412 = vmul.f32 1.0, %v411
    %v413 = vrcp.pop %v397
    %v414 = vmul.f32 %v397, %v413
    %v415 = vsub.f32 1.0, %v414
    %v416 = vmul.f32 %v413, %v415
    %v417 = vadd.f32 %v413, %v416
    %vm418 = vweird.f32 %v397
    %vm419 = vweird.f32 %v413
    %vm420 = vmor %vm418, %vm419
    %v421 = vsel %vm420, %v413, %v417
    %v422 = vand.u32 2147483647, %v397
    %vm423 = vcmp.eq.f32.partialorder %v422, 8.507059e+37
    %v424 = vand.u32 %v397, 2147483648
    %v425 = vor.u32 1.1754944e-38, %v424
    %v426 = vsel %vm423, %v425, %v421
    %v427 = vmul.f32 1.0, %v426
    %430 = vrot.lane.b32.xlu0 %v412, 96
    %v431 = vpop.permute.xlu0 %430
    %432 = vrot.lane.b32.xlu0 %v427, 96
    %v433 = vpop.permute.xlu0 %432
    %v436 = vmul.f32 %v385, %v431
    %v437 = vmul.f32 %v388, %v433
    %v438 = vadd.f32 %v30, %v436
    %v439 = vadd.f32 %v31, %v437
    %v440 = vsel %vm46, %v438, 0.0
    %441 = vadd.xlane.f32.xlu0 %v440
    %v442 = vpop.xlane.xlu0 %441
    %v443 = vsel %vm46, %v439, 0.0
    %444 = vadd.xlane.f32.xlu0 %v443
    %v445 = vpop.xlane.xlu0 %444
    %v446 = vrcp.pop 32.0
    %v447 = vmul.f32 32.0, %v446
    %v448 = vsub.f32 1.0, %v447
    %v449 = vmul.f32 %v446, %v448
    %v450 = vadd.f32 %v446, %v449
    %vm451 = vweird.f32 %v446
    %v452 = vsel %vm451, %v446, %v450
    %v453 = vmul.f32 %v442, %v452
    %v454 = vmul.f32 %v445, %v452
    %v455 = vsub.f32 %v438, %v453
    %v456 = vsub.f32 %v439, %v454
    %v457 = vmul.f32 %v455, %v455
    %v458 = vmul.f32 %v456, %v456
    %v459 = vsel %vm46, %v457, 0.0
    %460 = vadd.xlane.f32.xlu0 %v459
    %v461 = vpop.xlane.xlu0 %460
    %v462 = vsel %vm46, %v458, 0.0
    %463 = vadd.xlane.f32.xlu0 %v462
    %v464 = vpop.xlane.xlu0 %463
    %v465 = vmul.f32 %v461, 0.032258064
    %v466 = vmul.f32 %v464, 0.032258064
    %v467 = vrsqrt.pop %v465
    %v468 = vmul.f32 %v467, %v465
    %v469 = vmul.f32 %v468, %v467
    %v470 = vmul.f32 0.5, %v469
    %v471 = vsub.f32 1.5, %v470
    %v472 = vmul.f32 %v467, %v471
    %v473 = vmul.f32 %v465, %v472
    %vm474 = vcmp.eq.f32.partialorder %v465, inf
    %v475 = vsel %vm474, %v465, %v473
    %vm476 = vcmp.eq.f32.partialorder %v465, 0.0
    %v477 = vand.u32 %v465, 2147483648
    %v478 = vsel %vm476, %v477, %v475
    %v479 = vrsqrt.pop %v466
    %v480 = vmul.f32 %v479, %v466
    %v481 = vmul.f32 %v480, %v479
    %v482 = vmul.f32 0.5, %v481
    %v483 = vsub.f32 1.5, %v482
    %v484 = vmul.f32 %v479, %v483
    %v485 = vmul.f32 %v466, %v484
    %vm486 = vcmp.eq.f32.partialorder %v466, inf
    %v487 = vsel %vm486, %v466, %v485
    %vm488 = vcmp.eq.f32.partialorder %v466, 0.0
    %v489 = vand.u32 %v466, 2147483648
    %v490 = vsel %vm488, %v489, %v487
    %v491 = vperm.slane %v40, 4
    %v492 = vmul.f32 %v491, %v455
    %v493 = vmul.f32 %v491, %v456
    %v494 = vadd.f32 %v478, 1e-06
    %v495 = vadd.f32 %v490, 1e-06
    %v496 = vrcp.pop %v494
    %v497 = vrcp.pop %v495
    %v498 = vmul.f32 %v492, %v496
    %v499 = vmul.f32 %v493, %v497
    %v500 = vperm.slane %v40, 5
    %v501 = vadd.f32 %v498, %v500
    %v502 = vadd.f32 %v499, %v500
    %v503 = vld [vmem:[%s5] sm:$0xff]
    %v504 = vld [vmem:[%s5 + $0x8] sm:$0xff]
    %v505 = vld [vmem:[%s5 + $0x10] sm:$0xff]
    %v506 = vld [vmem:[%s5 + $0x18] sm:$0xff]
    %v507 = vperm.slane %v40, 2
    %v509 = vsel %vm46, %v501, 0
    %v512 = vsel %vm46, %v502, 0
    %514 = vmatpush.msra.mxu0 0.0
    %515 = vmatpush.msra.mxu0 0.0
    %516 = vmatpush.msra.mxu0 0.0
    %517 = vmatpush.msra.mxu0 0.0
    %518 = vmatpush.msra.mxu0 0.0
    %519 = vmatpush.msra.mxu0 0.0
    %520 = vmatpush.msra.mxu0 0.0
    %521 = vmatpush.msra.mxu0 0.0
    %522 = vmatpush.msra.mxu0 0.0
    %523 = vmatpush.msra.mxu0 0.0
    %524 = vmatpush.msra.mxu0 0.0
    %525 = vmatpush.msra.mxu0 0.0
    %526 = vmatpush.msra.mxu0 %v506
    %527 = vmatpush.msra.mxu0 %v505
    %528 = vmatpush.msra.mxu0 %v504
    %529 = vmatpush.msra.mxu0 %v503
    %530 = vmatmul.f32.gmra.mxu0 %v509
    %v531 = vpop.f32.mrf.mxu0
    %v532 = vadd.f32 %v507, %v531
    %533 = vmatmul.f32.gmra.mxu0 %v512
    %v534 = vpop.f32.mrf.mxu0
    %v535 = vadd.f32 %v507, %v534
    %536 = vdwg.mxu0
    %v537 = vmax.f32 %v532, 0.0
    %v538 = vmax.f32 %v535, 0.0
    %v539 = vld [vmem:[%s6] sm:$0xff]
    %v540 = vld [vmem:[%s6 + $0x8] sm:$0xff]
    %v541 = vld [vmem:[%s6 + $0x10] sm:$0xff]
    %v542 = vld [vmem:[%s6 + $0x18] sm:$0xff]
    %v543 = vld [vmem:[%s6 + $0x20] sm:$0xff]
    %v544 = vld [vmem:[%s6 + $0x28] sm:$0xff]
    %v545 = vld [vmem:[%s6 + $0x30] sm:$0xff]
    %v546 = vld [vmem:[%s6 + $0x38] sm:$0xff]
    %v547 = vperm.slane %v40, 3
    %v549 = vsel %vm360, %v537, 0
    %v552 = vsel %vm360, %v538, 0
    %554 = vmatpush.msra.mxu0 0.0
    %555 = vmatpush.msra.mxu0 0.0
    %556 = vmatpush.msra.mxu0 0.0
    %557 = vmatpush.msra.mxu0 0.0
    %558 = vmatpush.msra.mxu0 0.0
    %559 = vmatpush.msra.mxu0 0.0
    %560 = vmatpush.msra.mxu0 0.0
    %561 = vmatpush.msra.mxu0 0.0
    %562 = vmatpush.msra.mxu0 %v546
    %563 = vmatpush.msra.mxu0 %v545
    %564 = vmatpush.msra.mxu0 %v544
    %565 = vmatpush.msra.mxu0 %v543
    %566 = vmatpush.msra.mxu0 %v542
    %567 = vmatpush.msra.mxu0 %v541
    %568 = vmatpush.msra.mxu0 %v540
    %569 = vmatpush.msra.mxu0 %v539
    %570 = vmatmul.f32.gmra.mxu0 %v549
    %v571 = vpop.f32.mrf.mxu0
    %v572 = vadd.f32 %v547, %v571
    %573 = vmatmul.f32.gmra.mxu0 %v552
    %v574 = vpop.f32.mrf.mxu0
    %v575 = vadd.f32 %v547, %v574
    %576 = vdwg.mxu0
    %v577 = vadd.f32 %v501, %v572
    %v578 = vadd.f32 %v502, %v575
    %v579 = vsel %vm46, %v577, 0.0
    %580 = vadd.xlane.f32.xlu0 %v579
    %v581 = vpop.xlane.xlu0 %580
    %v582 = vsel %vm46, %v578, 0.0
    %583 = vadd.xlane.f32.xlu0 %v582
    %v584 = vpop.xlane.xlu0 %583
    %v585 = vmul.f32 %v581, %v452
    %v586 = vmul.f32 %v584, %v452
    %v587 = vsub.f32 %v577, %v585
    %v588 = vsub.f32 %v578, %v586
    %v589 = vmul.f32 %v587, %v587
    %v590 = vmul.f32 %v588, %v588
    %v591 = vsel %vm46, %v589, 0.0
    %592 = vadd.xlane.f32.xlu0 %v591
    %v593 = vpop.xlane.xlu0 %592
    %v594 = vsel %vm46, %v590, 0.0
    %595 = vadd.xlane.f32.xlu0 %v594
    %v596 = vpop.xlane.xlu0 %595
    %v597 = vmul.f32 %v593, 0.032258064
    %v598 = vmul.f32 %v596, 0.032258064
    %v599 = vrsqrt.pop %v597
    %v600 = vmul.f32 %v599, %v597
    %v601 = vmul.f32 %v600, %v599
    %v602 = vmul.f32 0.5, %v601
    %v603 = vsub.f32 1.5, %v602
    %v604 = vmul.f32 %v599, %v603
    %v605 = vmul.f32 %v597, %v604
    %vm606 = vcmp.eq.f32.partialorder %v597, inf
    %v607 = vsel %vm606, %v597, %v605
    %vm608 = vcmp.eq.f32.partialorder %v597, 0.0
    %v609 = vand.u32 %v597, 2147483648
    %v610 = vsel %vm608, %v609, %v607
    %v611 = vrsqrt.pop %v598
    %v612 = vmul.f32 %v611, %v598
    %v613 = vmul.f32 %v612, %v611
    %v614 = vmul.f32 0.5, %v613
    %v615 = vsub.f32 1.5, %v614
    %v616 = vmul.f32 %v611, %v615
    %v617 = vmul.f32 %v598, %v616
    %vm618 = vcmp.eq.f32.partialorder %v598, inf
    %v619 = vsel %vm618, %v598, %v617
    %vm620 = vcmp.eq.f32.partialorder %v598, 0.0
    %v621 = vand.u32 %v598, 2147483648
    %v622 = vsel %vm620, %v621, %v619
    %v623 = vperm.slane %v40, 6
    %v624 = vmul.f32 %v623, %v587
    %v625 = vmul.f32 %v623, %v588
    %v626 = vadd.f32 %v610, 1e-06
    %v627 = vadd.f32 %v622, 1e-06
    %v628 = vrcp.pop %v626
    %v629 = vrcp.pop %v627
    %v630 = vmul.f32 %v624, %v628
    %v631 = vmul.f32 %v625, %v629
    %v632 = vperm.slane %v40, 7
    %v633 = vadd.f32 %v630, %v632
    %v634 = vadd.f32 %v631, %v632
    %635 = vst.msk [vmem:[#allocation2] sm:$0xff] %vm46, %v633
    %636 = vst.msk [vmem:[#allocation2 + $0x8] sm:$0xff] %vm46, %v634
    // Predicated region
    $region34: #{tpu_custom_call.1} parent=1 // pred_check
      _
    $region35: #{tpu_custom_call.1} parent=1 // pred_check_branch
      %638 = sbr.rel (0) target = $region37
    $region36: #{tpu_custom_call.1} parent=1 // pred_region
      %640 = vsyncadd [#allocation3], 0
      %s641 = sshll.u32 [#allocation2], 4
      %s642 = int_to_ptr.vmem [resolvable:$true] %s641
      %s643 = sshll.u32 %s8, 4
      %s644 = int_to_ptr.hbm [resolvable:$true] %s643
      %649 = dma.vmem_to_hbm [thread:$0]  %s642, 256, %s644, [#allocation3], 128, 128, 8
    $region37: #{tpu_custom_call.1} parent=1 // pred_fallthru
      _
    // Predicated region
    $region38: #{tpu_custom_call.1} parent=1 // pred_check
      _
    $region39: #{tpu_custom_call.1} parent=1 // pred_check_branch
      %651 = sbr.rel (0) target = $region41
    $region40: #{tpu_custom_call.1} parent=1 // pred_region
      %653 = dma.done [#allocation3], 256
    $region41: #{tpu_custom_call.1} parent=1 // pred_fallthru
      _
    %654 = vsyncpa [#allocation3], 1

</llo_original>
